<compile_context>
chip_gen: v5e
topology: v5e:2x2
jax: 0.10.0
libtpu: 0.0.40
codegen_flags: <defaults>
</compile_context>

<pallas_src>
import math
import functools

import numpy as np
import jax
import jax.numpy as jnp
from jax import lax
from jax.experimental import pallas as pl
from jax.experimental.pallas import tpu as pltpu


def _pick_time_chunk(seq, max_chunk=32):
    """Largest divisor of seq that is <= max_chunk (timesteps per grid step)."""
    for c in range(min(seq, max_chunk), 0, -1):
        if seq % c == 0:
            return c
    return 1


def _lstm_recurrence_kernel(
    xp_ref,        # (T_BLOCK, bt, 4H) f32 -- precomputed x@U4 + b4 (time-major)
    v_ref,         # (H, 4H)           -- fused recurrent weights (f32 or bf16)
    h0_ref,        # (bt, H)           f32 -- initial hidden state
    c0_ref,        # (bt, H)           f32 -- initial cell state
    hseq_ref,      # (T_BLOCK, bt, H)  out -- hidden states for this chunk
    hT_ref,        # (bt, H)           out -- final hidden state
    cT_ref,        # (bt, H)           out -- final cell state
    h_sc, c_sc,    # (bt, H) f32 VMEM scratch carries (persist across chunks)
):
    t = pl.program_id(1)                       # time-chunk index (sequential)
    T_BLOCK = xp_ref.shape[0]
    H = hT_ref.shape[-1]

    @pl.when(t == 0)
    def _():
        h_sc[...] = h0_ref[...]
        c_sc[...] = c0_ref[...]

    V = v_ref[...]                             # (H, 4H), VMEM-resident

    def step(j, carry):
        h, c = carry                           # f32 (bt, H)
        # One fused recurrent matmul per step; x-side projection is hoisted.
        pre = xp_ref[j] + jnp.dot(h.astype(V.dtype), V,
                                  preferred_element_type=jnp.float32)
        i_t = jax.nn.sigmoid(pre[:, 0 * H:1 * H])
        f_t = jax.nn.sigmoid(pre[:, 1 * H:2 * H])
        g_t = jnp.tanh(pre[:, 2 * H:3 * H])
        o_t = jax.nn.sigmoid(pre[:, 3 * H:4 * H])
        c = f_t * c + i_t * g_t
        h = o_t * jnp.tanh(c)
        hseq_ref[j] = h.astype(hseq_ref.dtype)
        return (h, c)

    h, c = lax.fori_loop(0, T_BLOCK, step, (h_sc[...], c_sc[...]), unroll=True)
    h_sc[...] = h
    c_sc[...] = c

    @pl.when(t == pl.num_programs(1) - 1)
    def _():
        hT_ref[...] = h.astype(hT_ref.dtype)
        cT_ref[...] = c.astype(cT_ref.dtype)


def native_custom_lstm(x, params, init_states=None, *, time_chunk=None,
                       batch_tile=None, matmul_dtype=None):
    """x: (bs, seq, input_sz) f32.  Returns (hidden_seq (bs, seq, H),
    (h_T (bs, H), c_T (bs, H))) matching the PyTorch forward."""
    bs, seq, input_sz = x.shape
    H = params["b_i"].shape[0]

    # bf16 operands only on a real TPU backend (MXU native); f32 elsewhere --
    # the CPU/interpret runtime has no BF16xBF16->F32 GEMM thunk.
    if matmul_dtype is None:
        matmul_dtype = (jnp.bfloat16 if jax.default_backend() == "tpu"
                        else jnp.float32)

    # ---- Gate fusion: [i | f | c | o] along the output (4H) dim. ----
    U4 = jnp.concatenate([params["U_i"], params["U_f"],
                          params["U_c"], params["U_o"]], axis=1)     # (F, 4H)
    V4 = jnp.concatenate([params["V_i"], params["V_f"],
                          params["V_c"], params["V_o"]], axis=1)     # (H, 4H)
    b4 = jnp.concatenate([params["b_i"], params["b_f"],
                          params["b_c"], params["b_o"]], axis=0)     # (4H,)

    # ---- Hoist the time-independent input projection off the recurrence. ----
    # One big, fully parallel GEMM with f32 accumulation, emitted time-major so
    # the recurrent kernel sees lane-dense (T_BLOCK, bt, 4H) slabs.
    xproj = jnp.einsum(
        "btf,fg->tbg",
        x.astype(matmul_dtype), U4.astype(matmul_dtype),
        preferred_element_type=jnp.float32) + b4                     # (seq, bs, 4H)
    xproj = xproj.astype(jnp.float32)

    V4_mm = V4.astype(matmul_dtype)

    if init_states is None:
        h0 = jnp.zeros((bs, H), jnp.float32)
        c0 = jnp.zeros((bs, H), jnp.float32)
    else:
        h0, c0 = init_states
        h0 = h0.astype(jnp.float32)
        c0 = c0.astype(jnp.float32)

    # ---- Tiling choices ----
    T_BLOCK = time_chunk if time_chunk is not None else _pick_time_chunk(seq)
    assert seq % T_BLOCK == 0, "time_chunk must divide seq"
    if batch_tile is None:
        # Split the batch across the parallel grid axis (2 TCs on v7x) only
        # when each tile keeps full sublane occupancy (multiple of 8).
        batch_tile = bs // 2 if (bs % 2 == 0 and (bs // 2) % 8 == 0) else bs
    bt = batch_tile
    assert bs % bt == 0, "batch_tile must divide bs"

    grid = (bs // bt, seq // T_BLOCK)

    # ---- VMEM budget heuristic (raise scoped limit only when needed). ----
    w_isz = np.dtype(matmul_dtype).itemsize
    est_vmem = (
        2 * (T_BLOCK * bt * 4 * H * 4)     # xproj blocks (double-buffered, f32)
        + 2 * (H * 4 * H * w_isz)          # V4 (constant index)
        + 2 * 2 * (bt * H * 4)             # h0 / c0 blocks
        + 2 * (T_BLOCK * bt * H * 4)       # hseq output blocks
        + 2 * 2 * (bt * H * 4)             # hT / cT output blocks
        + 2 * (bt * H * 4)                 # scratch carries
    )
    vmem_limit = None
    if est_vmem > 12 * 1024 * 1024:
        # Keep headroom below v7x's 64 MiB physical VMEM; v5e/v6e have 128 MiB.
        vmem_limit = int(min(2 * est_vmem, 56 * 1024 * 1024))

    hseq_tbf, h_T, c_T = pl.pallas_call(
        _lstm_recurrence_kernel,
        out_shape=(
            jax.ShapeDtypeStruct((seq, bs, H), x.dtype),   # hidden_seq (time-major)
            jax.ShapeDtypeStruct((bs, H), x.dtype),        # h_T
            jax.ShapeDtypeStruct((bs, H), x.dtype),        # c_T
        ),
        grid_spec=pltpu.PrefetchScalarGridSpec(
            num_scalar_prefetch=0,
            grid=grid,
            in_specs=[
                pl.BlockSpec((T_BLOCK, bt, 4 * H), lambda b, t: (t, b, 0)),
                pl.BlockSpec((H, 4 * H), lambda b, t: (0, 0)),
                pl.BlockSpec((bt, H), lambda b, t: (b, 0)),
                pl.BlockSpec((bt, H), lambda b, t: (b, 0)),
            ],
            out_specs=(
                pl.BlockSpec((T_BLOCK, bt, H), lambda b, t: (t, b, 0)),
                pl.BlockSpec((bt, H), lambda b, t: (b, 0)),
                pl.BlockSpec((bt, H), lambda b, t: (b, 0)),
            ),
            scratch_shapes=[
                pltpu.VMEM((bt, H), jnp.float32),
                pltpu.VMEM((bt, H), jnp.float32),
            ],
        ),
        compiler_params=pltpu.CompilerParams(
            dimension_semantics=("parallel", "arbitrary"),
            vmem_limit_bytes=vmem_limit,
        ),
    )(xproj, V4_mm, h0, c0)

    hidden_seq = jnp.transpose(hseq_tbf, (1, 0, 2))    # (bs, seq, H)
    return hidden_seq, (h_T, c_T)


def init_params(key, input_sz, hidden_sz):
    stdv = 1.0 / math.sqrt(hidden_sz)
    names = ["U_i", "V_i", "b_i", "U_f", "V_f", "b_f",
             "U_c", "V_c", "b_c", "U_o", "V_o", "b_o"]
    shapes = {
        "U": (input_sz, hidden_sz),
        "V": (hidden_sz, hidden_sz),
        "b": (hidden_sz,),
    }
    keys = jax.random.split(key, len(names))
    params = {}
    for name, k in zip(names, keys):
        shape = shapes[name[0]]
        params[name] = jax.random.uniform(
            k, shape, jnp.float32, minval=-stdv, maxval=stdv)
    return params


def lstm_reference(x, params):
    """Pure-JAX f32 reference matching the PyTorch forward exactly."""
    bs, seq, _ = x.shape
    H = params["b_i"].shape[0]
    h = jnp.zeros((bs, H), jnp.float32)
    c = jnp.zeros((bs, H), jnp.float32)

    def step(carry, x_t):
        h, c = carry
        i = jax.nn.sigmoid(x_t @ params["U_i"] + h @ params["V_i"] + params["b_i"])
        f = jax.nn.sigmoid(x_t @ params["U_f"] + h @ params["V_f"] + params["b_f"])
        g = jnp.tanh(x_t @ params["U_c"] + h @ params["V_c"] + params["b_c"])
        o = jax.nn.sigmoid(x_t @ params["U_o"] + h @ params["V_o"] + params["b_o"])
        c = f * c + i * g
        h = o * jnp.tanh(c)
        return (h, c), h

    (h, c), hs = jax.lax.scan(step, (h, c), jnp.transpose(x, (1, 0, 2)))
    return jnp.transpose(hs, (1, 0, 2)), (h, c)


if __name__ == "__main__":
    bs, seq, input_sz, hidden_sz = 2, 8, 16, 32

    key = jax.random.PRNGKey(0)
    k_params, k_x = jax.random.split(key)
    params = init_params(k_params, input_sz, hidden_sz)
    x = jax.random.normal(k_x, (bs, seq, input_sz), jnp.float32)

    fwd = jax.jit(functools.partial(native_custom_lstm))
    hidden_seq, (h_T, c_T) = jax.block_until_ready(fwd(x, params))

    hs_ref, (h_ref, c_ref) = lstm_reference(x, params)
    assert hidden_seq.shape == (bs, seq, hidden_sz)
    # On TPU the matmul operands are bf16 (f32 accumulate) -> loosened tolerance.
    assert jnp.allclose(hidden_seq, hs_ref, atol=2e-2, rtol=2e-2)
    assert jnp.allclose(h_T, h_ref, atol=2e-2, rtol=2e-2)
    assert jnp.allclose(c_T, c_ref, atol=2e-2, rtol=2e-2)

    print("KERNEL_OK")
</pallas_src>

<mosaic_0001>
module attributes {stable_mosaic.version = 11 : i64} {
  func.func @_lstm_recurrence_kernel(%arg0: i32, %arg1: i32, %arg2: memref<8x2x128xf32, #tpu.memory_space<vmem>>, %arg3: memref<32x128xf32, #tpu.memory_space<vmem>>, %arg4: memref<2x32xf32, #tpu.memory_space<vmem>>, %arg5: memref<2x32xf32, #tpu.memory_space<vmem>>, %arg6: memref<8x2x32xf32, #tpu.memory_space<vmem>>, %arg7: memref<2x32xf32, #tpu.memory_space<vmem>>, %arg8: memref<2x32xf32, #tpu.memory_space<vmem>>, %arg9: memref<2x32xf32, #tpu.memory_space<vmem>>, %arg10: memref<2x32xf32, #tpu.memory_space<vmem>>) attributes {dimension_semantics = [#tpu.dimension_semantics<parallel>, #tpu.dimension_semantics<arbitrary>], iteration_bounds = array<i64: 1, 1>, scalar_prefetch = 0 : i64, scratch_operands = 2 : i64, tpu.core_type = #tpu.core_type<tc>, window_params = [{transform_indices = @transform_0, window_bounds = array<i64: 8, 2, 128>}, {pipeline_mode = #tpu.pipeline_mode<synchronous>, transform_indices = @transform_1, window_bounds = array<i64: 32, 128>}, {transform_indices = @transform_2, window_bounds = array<i64: 2, 32>}, {transform_indices = @transform_3, window_bounds = array<i64: 2, 32>}, {transform_indices = @transform_4, window_bounds = array<i64: 8, 2, 32>}, {transform_indices = @transform_5, window_bounds = array<i64: 2, 32>}, {transform_indices = @transform_6, window_bounds = array<i64: 2, 32>}]} {
    %c0_i32 = arith.constant 0 : i32
    %0 = arith.cmpi eq, %arg1, %c0_i32 : i32
    %1 = arith.extui %0 : i1 to i32
    %c0_i32_0 = arith.constant 0 : i32
    %2 = arith.cmpi ne, %1, %c0_i32_0 : i32
    scf.if %2 {
      %c0_76 = arith.constant 0 : index
      %c0_77 = arith.constant 0 : index
      %283 = vector.load %arg4[%c0_76, %c0_77] : memref<2x32xf32, #tpu.memory_space<vmem>>, vector<2x32xf32>
      %c0_78 = arith.constant 0 : index
      %c0_79 = arith.constant 0 : index
      %284 = vector.load %arg9[%c0_78, %c0_79] : memref<2x32xf32, #tpu.memory_space<vmem>>, vector<2x32xf32>
      tpu.vector_store %arg9[%c0_78, %c0_79], %283 {strides = array<i32>} : memref<2x32xf32, #tpu.memory_space<vmem>>, vector<2x32xf32>,
      %c0_80 = arith.constant 0 : index
      %c0_81 = arith.constant 0 : index
      %285 = vector.load %arg5[%c0_80, %c0_81] : memref<2x32xf32, #tpu.memory_space<vmem>>, vector<2x32xf32>
      %c0_82 = arith.constant 0 : index
      %c0_83 = arith.constant 0 : index
      %286 = vector.load %arg10[%c0_82, %c0_83] : memref<2x32xf32, #tpu.memory_space<vmem>>, vector<2x32xf32>
      tpu.vector_store %arg10[%c0_82, %c0_83], %285 {strides = array<i32>} : memref<2x32xf32, #tpu.memory_space<vmem>>, vector<2x32xf32>,
    } else {
    }
    %c0 = arith.constant 0 : index
    %c0_1 = arith.constant 0 : index
    %3 = vector.load %arg3[%c0, %c0_1] : memref<32x128xf32, #tpu.memory_space<vmem>>, vector<32x128xf32>
    %c0_2 = arith.constant 0 : index
    %c0_3 = arith.constant 0 : index
    %4 = vector.load %arg9[%c0_2, %c0_3] : memref<2x32xf32, #tpu.memory_space<vmem>>, vector<2x32xf32>
    %c0_4 = arith.constant 0 : index
    %c0_5 = arith.constant 0 : index
    %5 = vector.load %arg10[%c0_4, %c0_5] : memref<2x32xf32, #tpu.memory_space<vmem>>, vector<2x32xf32>
    %c0_i32_6 = arith.constant 0 : i32
    %6 = arith.index_cast %c0_i32_6 : i32 to index
    %c0_7 = arith.constant 0 : index
    %c0_8 = arith.constant 0 : index
    %7 = vector.load %arg2[%6, %c0_7, %c0_8] : memref<8x2x128xf32, #tpu.memory_space<vmem>>, vector<1x2x128xf32>
    %8 = vector.shape_cast %7 : vector<1x2x128xf32> to vector<2x128xf32>
    %cst = arith.constant dense<0.000000e+00> : vector<2x128xf32>
    %9 = tpu.matmul %4, %3, %cst {dimension_numbers = #tpu.dot_dimension_numbers<[1], [0], [0], [1], [0, 0, 1, 1], [], []>} : vector<2x32xf32>, vector<32x128xf32>, vector<2x128xf32> -> vector<2x128xf32>
    %10 = arith.addf %8, %9 : vector<2x128xf32>
    %11 = vector.extract_strided_slice %10 {offsets = [0, 0], sizes = [2, 32], strides = [1, 1]} : vector<2x128xf32> to vector<2x32xf32>
    %12 = arith.negf %11 : vector<2x32xf32>
    %13 = math.exp %12 : vector<2x32xf32>
    %cst_9 = arith.constant 1.000000e+00 : f32
    %14 = vector.broadcast %cst_9 : f32 to vector<2x32xf32>
    %15 = arith.addf %14, %13 : vector<2x32xf32>
    %16 = arith.divf %14, %15 : vector<2x32xf32>
    %17 = vector.extract_strided_slice %10 {offsets = [0, 32], sizes = [2, 32], strides = [1, 1]} : vector<2x128xf32> to vector<2x32xf32>
    %18 = arith.negf %17 : vector<2x32xf32>
    %19 = math.exp %18 : vector<2x32xf32>
    %cst_10 = arith.constant 1.000000e+00 : f32
    %20 = vector.broadcast %cst_10 : f32 to vector<2x32xf32>
    %21 = arith.addf %20, %19 : vector<2x32xf32>
    %22 = arith.divf %20, %21 : vector<2x32xf32>
    %23 = vector.extract_strided_slice %10 {offsets = [0, 64], sizes = [2, 32], strides = [1, 1]} : vector<2x128xf32> to vector<2x32xf32>
    %24 = math.tanh %23 : vector<2x32xf32>
    %25 = vector.extract_strided_slice %10 {offsets = [0, 96], sizes = [2, 32], strides = [1, 1]} : vector<2x128xf32> to vector<2x32xf32>
    %26 = arith.negf %25 : vector<2x32xf32>
    %27 = math.exp %26 : vector<2x32xf32>
    %cst_11 = arith.constant 1.000000e+00 : f32
    %28 = vector.broadcast %cst_11 : f32 to vector<2x32xf32>
    %29 = arith.addf %28, %27 : vector<2x32xf32>
    %30 = arith.divf %28, %29 : vector<2x32xf32>
    %31 = arith.mulf %22, %5 : vector<2x32xf32>
    %32 = arith.mulf %16, %24 : vector<2x32xf32>
    %33 = arith.addf %31, %32 : vector<2x32xf32>
    %34 = math.tanh %33 : vector<2x32xf32>
    %35 = arith.mulf %30, %34 : vector<2x32xf32>
    %36 = arith.index_cast %c0_i32_6 : i32 to index
    %c0_12 = arith.constant 0 : index
    %c0_13 = arith.constant 0 : index
    %37 = vector.load %arg6[%36, %c0_12, %c0_13] : memref<8x2x32xf32, #tpu.memory_space<vmem>>, vector<1x2x32xf32>
    %38 = vector.shape_cast %37 : vector<1x2x32xf32> to vector<2x32xf32>
    %39 = vector.shape_cast %35 : vector<2x32xf32> to vector<1x2x32xf32>
    tpu.vector_store %arg6[%36, %c0_12, %c0_13], %39 {strides = array<i32>} : memref<8x2x32xf32, #tpu.memory_space<vmem>>, vector<1x2x32xf32>,
    %c1_i32 = arith.constant 1 : i32
    %40 = arith.index_cast %c1_i32 : i32 to index
    %c0_14 = arith.constant 0 : index
    %c0_15 = arith.constant 0 : index
    %41 = vector.load %arg2[%40, %c0_14, %c0_15] : memref<8x2x128xf32, #tpu.memory_space<vmem>>, vector<1x2x128xf32>
    %42 = vector.shape_cast %41 : vector<1x2x128xf32> to vector<2x128xf32>
    %cst_16 = arith.constant dense<0.000000e+00> : vector<2x128xf32>
    %43 = tpu.matmul %35, %3, %cst_16 {dimension_numbers = #tpu.dot_dimension_numbers<[1], [0], [0], [1], [0, 0, 1, 1], [], []>} : vector<2x32xf32>, vector<32x128xf32>, vector<2x128xf32> -> vector<2x128xf32>
    %44 = arith.addf %42, %43 : vector<2x128xf32>
    %45 = vector.extract_strided_slice %44 {offsets = [0, 0], sizes = [2, 32], strides = [1, 1]} : vector<2x128xf32> to vector<2x32xf32>
    %46 = arith.negf %45 : vector<2x32xf32>
    %47 = math.exp %46 : vector<2x32xf32>
    %cst_17 = arith.constant 1.000000e+00 : f32
    %48 = vector.broadcast %cst_17 : f32 to vector<2x32xf32>
    %49 = arith.addf %48, %47 : vector<2x32xf32>
    %50 = arith.divf %48, %49 : vector<2x32xf32>
    %51 = vector.extract_strided_slice %44 {offsets = [0, 32], sizes = [2, 32], strides = [1, 1]} : vector<2x128xf32> to vector<2x32xf32>
    %52 = arith.negf %51 : vector<2x32xf32>
    %53 = math.exp %52 : vector<2x32xf32>
    %cst_18 = arith.constant 1.000000e+00 : f32
    %54 = vector.broadcast %cst_18 : f32 to vector<2x32xf32>
    %55 = arith.addf %54, %53 : vector<2x32xf32>
    %56 = arith.divf %54, %55 : vector<2x32xf32>
    %57 = vector.extract_strided_slice %44 {offsets = [0, 64], sizes = [2, 32], strides = [1, 1]} : vector<2x128xf32> to vector<2x32xf32>
    %58 = math.tanh %57 : vector<2x32xf32>
    %59 = vector.extract_strided_slice %44 {offsets = [0, 96], sizes = [2, 32], strides = [1, 1]} : vector<2x128xf32> to vector<2x32xf32>
    %60 = arith.negf %59 : vector<2x32xf32>
    %61 = math.exp %60 : vector<2x32xf32>
    %cst_19 = arith.constant 1.000000e+00 : f32
    %62 = vector.broadcast %cst_19 : f32 to vector<2x32xf32>
    %63 = arith.addf %62, %61 : vector<2x32xf32>
    %64 = arith.divf %62, %63 : vector<2x32xf32>
    %65 = arith.mulf %56, %33 : vector<2x32xf32>
    %66 = arith.mulf %50, %58 : vector<2x32xf32>
    %67 = arith.addf %65, %66 : vector<2x32xf32>
    %68 = math.tanh %67 : vector<2x32xf32>
    %69 = arith.mulf %64, %68 : vector<2x32xf32>
    %70 = arith.index_cast %c1_i32 : i32 to index
    %c0_20 = arith.constant 0 : index
    %c0_21 = arith.constant 0 : index
    %71 = vector.load %arg6[%70, %c0_20, %c0_21] : memref<8x2x32xf32, #tpu.memory_space<vmem>>, vector<1x2x32xf32>
    %72 = vector.shape_cast %71 : vector<1x2x32xf32> to vector<2x32xf32>
    %73 = vector.shape_cast %69 : vector<2x32xf32> to vector<1x2x32xf32>
    tpu.vector_store %arg6[%70, %c0_20, %c0_21], %73 {strides = array<i32>} : memref<8x2x32xf32, #tpu.memory_space<vmem>>, vector<1x2x32xf32>,
    %c2_i32 = arith.constant 2 : i32
    %74 = arith.index_cast %c2_i32 : i32 to index
    %c0_22 = arith.constant 0 : index
    %c0_23 = arith.constant 0 : index
    %75 = vector.load %arg2[%74, %c0_22, %c0_23] : memref<8x2x128xf32, #tpu.memory_space<vmem>>, vector<1x2x128xf32>
    %76 = vector.shape_cast %75 : vector<1x2x128xf32> to vector<2x128xf32>
    %cst_24 = arith.constant dense<0.000000e+00> : vector<2x128xf32>
    %77 = tpu.matmul %69, %3, %cst_24 {dimension_numbers = #tpu.dot_dimension_numbers<[1], [0], [0], [1], [0, 0, 1, 1], [], []>} : vector<2x32xf32>, vector<32x128xf32>, vector<2x128xf32> -> vector<2x128xf32>
    %78 = arith.addf %76, %77 : vector<2x128xf32>
    %79 = vector.extract_strided_slice %78 {offsets = [0, 0], sizes = [2, 32], strides = [1, 1]} : vector<2x128xf32> to vector<2x32xf32>
    %80 = arith.negf %79 : vector<2x32xf32>
    %81 = math.exp %80 : vector<2x32xf32>
    %cst_25 = arith.constant 1.000000e+00 : f32
    %82 = vector.broadcast %cst_25 : f32 to vector<2x32xf32>
    %83 = arith.addf %82, %81 : vector<2x32xf32>
    %84 = arith.divf %82, %83 : vector<2x32xf32>
    %85 = vector.extract_strided_slice %78 {offsets = [0, 32], sizes = [2, 32], strides = [1, 1]} : vector<2x128xf32> to vector<2x32xf32>
    %86 = arith.negf %85 : vector<2x32xf32>
    %87 = math.exp %86 : vector<2x32xf32>
    %cst_26 = arith.constant 1.000000e+00 : f32
    %88 = vector.broadcast %cst_26 : f32 to vector<2x32xf32>
    %89 = arith.addf %88, %87 : vector<2x32xf32>
    %90 = arith.divf %88, %89 : vector<2x32xf32>
    %91 = vector.extract_strided_slice %78 {offsets = [0, 64], sizes = [2, 32], strides = [1, 1]} : vector<2x128xf32> to vector<2x32xf32>
    %92 = math.tanh %91 : vector<2x32xf32>
    %93 = vector.extract_strided_slice %78 {offsets = [0, 96], sizes = [2, 32], strides = [1, 1]} : vector<2x128xf32> to vector<2x32xf32>
    %94 = arith.negf %93 : vector<2x32xf32>
    %95 = math.exp %94 : vector<2x32xf32>
    %cst_27 = arith.constant 1.000000e+00 : f32
    %96 = vector.broadcast %cst_27 : f32 to vector<2x32xf32>
    %97 = arith.addf %96, %95 : vector<2x32xf32>
    %98 = arith.divf %96, %97 : vector<2x32xf32>
    %99 = arith.mulf %90, %67 : vector<2x32xf32>
    %100 = arith.mulf %84, %92 : vector<2x32xf32>
    %101 = arith.addf %99, %100 : vector<2x32xf32>
    %102 = math.tanh %101 : vector<2x32xf32>
    %103 = arith.mulf %98, %102 : vector<2x32xf32>
    %104 = arith.index_cast %c2_i32 : i32 to index
    %c0_28 = arith.constant 0 : index
    %c0_29 = arith.constant 0 : index
    %105 = vector.load %arg6[%104, %c0_28, %c0_29] : memref<8x2x32xf32, #tpu.memory_space<vmem>>, vector<1x2x32xf32>
    %106 = vector.shape_cast %105 : vector<1x2x32xf32> to vector<2x32xf32>
    %107 = vector.shape_cast %103 : vector<2x32xf32> to vector<1x2x32xf32>
    tpu.vector_store %arg6[%104, %c0_28, %c0_29], %107 {strides = array<i32>} : memref<8x2x32xf32, #tpu.memory_space<vmem>>, vector<1x2x32xf32>,
    %c3_i32 = arith.constant 3 : i32
    %108 = arith.index_cast %c3_i32 : i32 to index
    %c0_30 = arith.constant 0 : index
    %c0_31 = arith.constant 0 : index
    %109 = vector.load %arg2[%108, %c0_30, %c0_31] : memref<8x2x128xf32, #tpu.memory_space<vmem>>, vector<1x2x128xf32>
    %110 = vector.shape_cast %109 : vector<1x2x128xf32> to vector<2x128xf32>
    %cst_32 = arith.constant dense<0.000000e+00> : vector<2x128xf32>
    %111 = tpu.matmul %103, %3, %cst_32 {dimension_numbers = #tpu.dot_dimension_numbers<[1], [0], [0], [1], [0, 0, 1, 1], [], []>} : vector<2x32xf32>, vector<32x128xf32>, vector<2x128xf32> -> vector<2x128xf32>
    %112 = arith.addf %110, %111 : vector<2x128xf32>
    %113 = vector.extract_strided_slice %112 {offsets = [0, 0], sizes = [2, 32], strides = [1, 1]} : vector<2x128xf32> to vector<2x32xf32>
    %114 = arith.negf %113 : vector<2x32xf32>
    %115 = math.exp %114 : vector<2x32xf32>
    %cst_33 = arith.constant 1.000000e+00 : f32
    %116 = vector.broadcast %cst_33 : f32 to vector<2x32xf32>
    %117 = arith.addf %116, %115 : vector<2x32xf32>
    %118 = arith.divf %116, %117 : vector<2x32xf32>
    %119 = vector.extract_strided_slice %112 {offsets = [0, 32], sizes = [2, 32], strides = [1, 1]} : vector<2x128xf32> to vector<2x32xf32>
    %120 = arith.negf %119 : vector<2x32xf32>
    %121 = math.exp %120 : vector<2x32xf32>
    %cst_34 = arith.constant 1.000000e+00 : f32
    %122 = vector.broadcast %cst_34 : f32 to vector<2x32xf32>
    %123 = arith.addf %122, %121 : vector<2x32xf32>
    %124 = arith.divf %122, %123 : vector<2x32xf32>
    %125 = vector.extract_strided_slice %112 {offsets = [0, 64], sizes = [2, 32], strides = [1, 1]} : vector<2x128xf32> to vector<2x32xf32>
    %126 = math.tanh %125 : vector<2x32xf32>
    %127 = vector.extract_strided_slice %112 {offsets = [0, 96], sizes = [2, 32], strides = [1, 1]} : vector<2x128xf32> to vector<2x32xf32>
    %128 = arith.negf %127 : vector<2x32xf32>
    %129 = math.exp %128 : vector<2x32xf32>
    %cst_35 = arith.constant 1.000000e+00 : f32
    %130 = vector.broadcast %cst_35 : f32 to vector<2x32xf32>
    %131 = arith.addf %130, %129 : vector<2x32xf32>
    %132 = arith.divf %130, %131 : vector<2x32xf32>
    %133 = arith.mulf %124, %101 : vector<2x32xf32>
    %134 = arith.mulf %118, %126 : vector<2x32xf32>
    %135 = arith.addf %133, %134 : vector<2x32xf32>
    %136 = math.tanh %135 : vector<2x32xf32>
    %137 = arith.mulf %132, %136 : vector<2x32xf32>
    %138 = arith.index_cast %c3_i32 : i32 to index
    %c0_36 = arith.constant 0 : index
    %c0_37 = arith.constant 0 : index
    %139 = vector.load %arg6[%138, %c0_36, %c0_37] : memref<8x2x32xf32, #tpu.memory_space<vmem>>, vector<1x2x32xf32>
    %140 = vector.shape_cast %139 : vector<1x2x32xf32> to vector<2x32xf32>
    %141 = vector.shape_cast %137 : vector<2x32xf32> to vector<1x2x32xf32>
    tpu.vector_store %arg6[%138, %c0_36, %c0_37], %141 {strides = array<i32>} : memref<8x2x32xf32, #tpu.memory_space<vmem>>, vector<1x2x32xf32>,
    %c4_i32 = arith.constant 4 : i32
    %142 = arith.index_cast %c4_i32 : i32 to index
    %c0_38 = arith.constant 0 : index
    %c0_39 = arith.constant 0 : index
    %143 = vector.load %arg2[%142, %c0_38, %c0_39] : memref<8x2x128xf32, #tpu.memory_space<vmem>>, vector<1x2x128xf32>
    %144 = vector.shape_cast %143 : vector<1x2x128xf32> to vector<2x128xf32>
    %cst_40 = arith.constant dense<0.000000e+00> : vector<2x128xf32>
    %145 = tpu.matmul %137, %3, %cst_40 {dimension_numbers = #tpu.dot_dimension_numbers<[1], [0], [0], [1], [0, 0, 1, 1], [], []>} : vector<2x32xf32>, vector<32x128xf32>, vector<2x128xf32> -> vector<2x128xf32>
    %146 = arith.addf %144, %145 : vector<2x128xf32>
    %147 = vector.extract_strided_slice %146 {offsets = [0, 0], sizes = [2, 32], strides = [1, 1]} : vector<2x128xf32> to vector<2x32xf32>
    %148 = arith.negf %147 : vector<2x32xf32>
    %149 = math.exp %148 : vector<2x32xf32>
    %cst_41 = arith.constant 1.000000e+00 : f32
    %150 = vector.broadcast %cst_41 : f32 to vector<2x32xf32>
    %151 = arith.addf %150, %149 : vector<2x32xf32>
    %152 = arith.divf %150, %151 : vector<2x32xf32>
    %153 = vector.extract_strided_slice %146 {offsets = [0, 32], sizes = [2, 32], strides = [1, 1]} : vector<2x128xf32> to vector<2x32xf32>
    %154 = arith.negf %153 : vector<2x32xf32>
    %155 = math.exp %154 : vector<2x32xf32>
    %cst_42 = arith.constant 1.000000e+00 : f32
    %156 = vector.broadcast %cst_42 : f32 to vector<2x32xf32>
    %157 = arith.addf %156, %155 : vector<2x32xf32>
    %158 = arith.divf %156, %157 : vector<2x32xf32>
    %159 = vector.extract_strided_slice %146 {offsets = [0, 64], sizes = [2, 32], strides = [1, 1]} : vector<2x128xf32> to vector<2x32xf32>
    %160 = math.tanh %159 : vector<2x32xf32>
    %161 = vector.extract_strided_slice %146 {offsets = [0, 96], sizes = [2, 32], strides = [1, 1]} : vector<2x128xf32> to vector<2x32xf32>
    %162 = arith.negf %161 : vector<2x32xf32>
    %163 = math.exp %162 : vector<2x32xf32>
    %cst_43 = arith.constant 1.000000e+00 : f32
    %164 = vector.broadcast %cst_43 : f32 to vector<2x32xf32>
    %165 = arith.addf %164, %163 : vector<2x32xf32>
    %166 = arith.divf %164, %165 : vector<2x32xf32>
    %167 = arith.mulf %158, %135 : vector<2x32xf32>
    %168 = arith.mulf %152, %160 : vector<2x32xf32>
    %169 = arith.addf %167, %168 : vector<2x32xf32>
    %170 = math.tanh %169 : vector<2x32xf32>
    %171 = arith.mulf %166, %170 : vector<2x32xf32>
    %172 = arith.index_cast %c4_i32 : i32 to index
    %c0_44 = arith.constant 0 : index
    %c0_45 = arith.constant 0 : index
    %173 = vector.load %arg6[%172, %c0_44, %c0_45] : memref<8x2x32xf32, #tpu.memory_space<vmem>>, vector<1x2x32xf32>
    %174 = vector.shape_cast %173 : vector<1x2x32xf32> to vector<2x32xf32>
    %175 = vector.shape_cast %171 : vector<2x32xf32> to vector<1x2x32xf32>
    tpu.vector_store %arg6[%172, %c0_44, %c0_45], %175 {strides = array<i32>} : memref<8x2x32xf32, #tpu.memory_space<vmem>>, vector<1x2x32xf32>,
    %c5_i32 = arith.constant 5 : i32
    %176 = arith.index_cast %c5_i32 : i32 to index
    %c0_46 = arith.constant 0 : index
    %c0_47 = arith.constant 0 : index
    %177 = vector.load %arg2[%176, %c0_46, %c0_47] : memref<8x2x128xf32, #tpu.memory_space<vmem>>, vector<1x2x128xf32>
    %178 = vector.shape_cast %177 : vector<1x2x128xf32> to vector<2x128xf32>
    %cst_48 = arith.constant dense<0.000000e+00> : vector<2x128xf32>
    %179 = tpu.matmul %171, %3, %cst_48 {dimension_numbers = #tpu.dot_dimension_numbers<[1], [0], [0], [1], [0, 0, 1, 1], [], []>} : vector<2x32xf32>, vector<32x128xf32>, vector<2x128xf32> -> vector<2x128xf32>
    %180 = arith.addf %178, %179 : vector<2x128xf32>
    %181 = vector.extract_strided_slice %180 {offsets = [0, 0], sizes = [2, 32], strides = [1, 1]} : vector<2x128xf32> to vector<2x32xf32>
    %182 = arith.negf %181 : vector<2x32xf32>
    %183 = math.exp %182 : vector<2x32xf32>
    %cst_49 = arith.constant 1.000000e+00 : f32
    %184 = vector.broadcast %cst_49 : f32 to vector<2x32xf32>
    %185 = arith.addf %184, %183 : vector<2x32xf32>
    %186 = arith.divf %184, %185 : vector<2x32xf32>
    %187 = vector.extract_strided_slice %180 {offsets = [0, 32], sizes = [2, 32], strides = [1, 1]} : vector<2x128xf32> to vector<2x32xf32>
    %188 = arith.negf %187 : vector<2x32xf32>
    %189 = math.exp %188 : vector<2x32xf32>
    %cst_50 = arith.constant 1.000000e+00 : f32
    %190 = vector.broadcast %cst_50 : f32 to vector<2x32xf32>
    %191 = arith.addf %190, %189 : vector<2x32xf32>
    %192 = arith.divf %190, %191 : vector<2x32xf32>
    %193 = vector.extract_strided_slice %180 {offsets = [0, 64], sizes = [2, 32], strides = [1, 1]} : vector<2x128xf32> to vector<2x32xf32>
    %194 = math.tanh %193 : vector<2x32xf32>
    %195 = vector.extract_strided_slice %180 {offsets = [0, 96], sizes = [2, 32], strides = [1, 1]} : vector<2x128xf32> to vector<2x32xf32>
    %196 = arith.negf %195 : vector<2x32xf32>
    %197 = math.exp %196 : vector<2x32xf32>
    %cst_51 = arith.constant 1.000000e+00 : f32
    %198 = vector.broadcast %cst_51 : f32 to vector<2x32xf32>
    %199 = arith.addf %198, %197 : vector<2x32xf32>
    %200 = arith.divf %198, %199 : vector<2x32xf32>
    %201 = arith.mulf %192, %169 : vector<2x32xf32>
    %202 = arith.mulf %186, %194 : vector<2x32xf32>
    %203 = arith.addf %201, %202 : vector<2x32xf32>
    %204 = math.tanh %203 : vector<2x32xf32>
    %205 = arith.mulf %200, %204 : vector<2x32xf32>
    %206 = arith.index_cast %c5_i32 : i32 to index
    %c0_52 = arith.constant 0 : index
    %c0_53 = arith.constant 0 : index
    %207 = vector.load %arg6[%206, %c0_52, %c0_53] : memref<8x2x32xf32, #tpu.memory_space<vmem>>, vector<1x2x32xf32>
    %208 = vector.shape_cast %207 : vector<1x2x32xf32> to vector<2x32xf32>
    %209 = vector.shape_cast %205 : vector<2x32xf32> to vector<1x2x32xf32>
    tpu.vector_store %arg6[%206, %c0_52, %c0_53], %209 {strides = array<i32>} : memref<8x2x32xf32, #tpu.memory_space<vmem>>, vector<1x2x32xf32>,
    %c6_i32 = arith.constant 6 : i32
    %210 = arith.index_cast %c6_i32 : i32 to index
    %c0_54 = arith.constant 0 : index
    %c0_55 = arith.constant 0 : index
    %211 = vector.load %arg2[%210, %c0_54, %c0_55] : memref<8x2x128xf32, #tpu.memory_space<vmem>>, vector<1x2x128xf32>
    %212 = vector.shape_cast %211 : vector<1x2x128xf32> to vector<2x128xf32>
    %cst_56 = arith.constant dense<0.000000e+00> : vector<2x128xf32>
    %213 = tpu.matmul %205, %3, %cst_56 {dimension_numbers = #tpu.dot_dimension_numbers<[1], [0], [0], [1], [0, 0, 1, 1], [], []>} : vector<2x32xf32>, vector<32x128xf32>, vector<2x128xf32> -> vector<2x128xf32>
    %214 = arith.addf %212, %213 : vector<2x128xf32>
    %215 = vector.extract_strided_slice %214 {offsets = [0, 0], sizes = [2, 32], strides = [1, 1]} : vector<2x128xf32> to vector<2x32xf32>
    %216 = arith.negf %215 : vector<2x32xf32>
    %217 = math.exp %216 : vector<2x32xf32>
    %cst_57 = arith.constant 1.000000e+00 : f32
    %218 = vector.broadcast %cst_57 : f32 to vector<2x32xf32>
    %219 = arith.addf %218, %217 : vector<2x32xf32>
    %220 = arith.divf %218, %219 : vector<2x32xf32>
    %221 = vector.extract_strided_slice %214 {offsets = [0, 32], sizes = [2, 32], strides = [1, 1]} : vector<2x128xf32> to vector<2x32xf32>
    %222 = arith.negf %221 : vector<2x32xf32>
    %223 = math.exp %222 : vector<2x32xf32>
    %cst_58 = arith.constant 1.000000e+00 : f32
    %224 = vector.broadcast %cst_58 : f32 to vector<2x32xf32>
    %225 = arith.addf %224, %223 : vector<2x32xf32>
    %226 = arith.divf %224, %225 : vector<2x32xf32>
    %227 = vector.extract_strided_slice %214 {offsets = [0, 64], sizes = [2, 32], strides = [1, 1]} : vector<2x128xf32> to vector<2x32xf32>
    %228 = math.tanh %227 : vector<2x32xf32>
    %229 = vector.extract_strided_slice %214 {offsets = [0, 96], sizes = [2, 32], strides = [1, 1]} : vector<2x128xf32> to vector<2x32xf32>
    %230 = arith.negf %229 : vector<2x32xf32>
    %231 = math.exp %230 : vector<2x32xf32>
    %cst_59 = arith.constant 1.000000e+00 : f32
    %232 = vector.broadcast %cst_59 : f32 to vector<2x32xf32>
    %233 = arith.addf %232, %231 : vector<2x32xf32>
    %234 = arith.divf %232, %233 : vector<2x32xf32>
    %235 = arith.mulf %226, %203 : vector<2x32xf32>
    %236 = arith.mulf %220, %228 : vector<2x32xf32>
    %237 = arith.addf %235, %236 : vector<2x32xf32>
    %238 = math.tanh %237 : vector<2x32xf32>
    %239 = arith.mulf %234, %238 : vector<2x32xf32>
    %240 = arith.index_cast %c6_i32 : i32 to index
    %c0_60 = arith.constant 0 : index
    %c0_61 = arith.constant 0 : index
    %241 = vector.load %arg6[%240, %c0_60, %c0_61] : memref<8x2x32xf32, #tpu.memory_space<vmem>>, vector<1x2x32xf32>
    %242 = vector.shape_cast %241 : vector<1x2x32xf32> to vector<2x32xf32>
    %243 = vector.shape_cast %239 : vector<2x32xf32> to vector<1x2x32xf32>
    tpu.vector_store %arg6[%240, %c0_60, %c0_61], %243 {strides = array<i32>} : memref<8x2x32xf32, #tpu.memory_space<vmem>>, vector<1x2x32xf32>,
    %c7_i32 = arith.constant 7 : i32
    %244 = arith.index_cast %c7_i32 : i32 to index
    %c0_62 = arith.constant 0 : index
    %c0_63 = arith.constant 0 : index
    %245 = vector.load %arg2[%244, %c0_62, %c0_63] : memref<8x2x128xf32, #tpu.memory_space<vmem>>, vector<1x2x128xf32>
    %246 = vector.shape_cast %245 : vector<1x2x128xf32> to vector<2x128xf32>
    %cst_64 = arith.constant dense<0.000000e+00> : vector<2x128xf32>
    %247 = tpu.matmul %239, %3, %cst_64 {dimension_numbers = #tpu.dot_dimension_numbers<[1], [0], [0], [1], [0, 0, 1, 1], [], []>} : vector<2x32xf32>, vector<32x128xf32>, vector<2x128xf32> -> vector<2x128xf32>
    %248 = arith.addf %246, %247 : vector<2x128xf32>
    %249 = vector.extract_strided_slice %248 {offsets = [0, 0], sizes = [2, 32], strides = [1, 1]} : vector<2x128xf32> to vector<2x32xf32>
    %250 = arith.negf %249 : vector<2x32xf32>
    %251 = math.exp %250 : vector<2x32xf32>
    %cst_65 = arith.constant 1.000000e+00 : f32
    %252 = vector.broadcast %cst_65 : f32 to vector<2x32xf32>
    %253 = arith.addf %252, %251 : vector<2x32xf32>
    %254 = arith.divf %252, %253 : vector<2x32xf32>
    %255 = vector.extract_strided_slice %248 {offsets = [0, 32], sizes = [2, 32], strides = [1, 1]} : vector<2x128xf32> to vector<2x32xf32>
    %256 = arith.negf %255 : vector<2x32xf32>
    %257 = math.exp %256 : vector<2x32xf32>
    %cst_66 = arith.constant 1.000000e+00 : f32
    %258 = vector.broadcast %cst_66 : f32 to vector<2x32xf32>
    %259 = arith.addf %258, %257 : vector<2x32xf32>
    %260 = arith.divf %258, %259 : vector<2x32xf32>
    %261 = vector.extract_strided_slice %248 {offsets = [0, 64], sizes = [2, 32], strides = [1, 1]} : vector<2x128xf32> to vector<2x32xf32>
    %262 = math.tanh %261 : vector<2x32xf32>
    %263 = vector.extract_strided_slice %248 {offsets = [0, 96], sizes = [2, 32], strides = [1, 1]} : vector<2x128xf32> to vector<2x32xf32>
    %264 = arith.negf %263 : vector<2x32xf32>
    %265 = math.exp %264 : vector<2x32xf32>
    %cst_67 = arith.constant 1.000000e+00 : f32
    %266 = vector.broadcast %cst_67 : f32 to vector<2x32xf32>
    %267 = arith.addf %266, %265 : vector<2x32xf32>
    %268 = arith.divf %266, %267 : vector<2x32xf32>
    %269 = arith.mulf %260, %237 : vector<2x32xf32>
    %270 = arith.mulf %254, %262 : vector<2x32xf32>
    %271 = arith.addf %269, %270 : vector<2x32xf32>
    %272 = math.tanh %271 : vector<2x32xf32>
    %273 = arith.mulf %268, %272 : vector<2x32xf32>
    %274 = arith.index_cast %c7_i32 : i32 to index
    %c0_68 = arith.constant 0 : index
    %c0_69 = arith.constant 0 : index
    %275 = vector.load %arg6[%274, %c0_68, %c0_69] : memref<8x2x32xf32, #tpu.memory_space<vmem>>, vector<1x2x32xf32>
    %276 = vector.shape_cast %275 : vector<1x2x32xf32> to vector<2x32xf32>
    %277 = vector.shape_cast %273 : vector<2x32xf32> to vector<1x2x32xf32>
    tpu.vector_store %arg6[%274, %c0_68, %c0_69], %277 {strides = array<i32>} : memref<8x2x32xf32, #tpu.memory_space<vmem>>, vector<1x2x32xf32>,
    %c8_i32 = arith.constant 8 : i32
    %c0_70 = arith.constant 0 : index
    %c0_71 = arith.constant 0 : index
    %278 = vector.load %arg9[%c0_70, %c0_71] : memref<2x32xf32, #tpu.memory_space<vmem>>, vector<2x32xf32>
    tpu.vector_store %arg9[%c0_70, %c0_71], %273 {strides = array<i32>} : memref<2x32xf32, #tpu.memory_space<vmem>>, vector<2x32xf32>,
    %c0_72 = arith.constant 0 : index
    %c0_73 = arith.constant 0 : index
    %279 = vector.load %arg10[%c0_72, %c0_73] : memref<2x32xf32, #tpu.memory_space<vmem>>, vector<2x32xf32>
    tpu.vector_store %arg10[%c0_72, %c0_73], %271 {strides = array<i32>} : memref<2x32xf32, #tpu.memory_space<vmem>>, vector<2x32xf32>,
    %c0_i32_74 = arith.constant 0 : i32
    %280 = arith.cmpi eq, %arg1, %c0_i32_74 : i32
    %281 = arith.extui %280 : i1 to i32
    %c0_i32_75 = arith.constant 0 : i32
    %282 = arith.cmpi ne, %281, %c0_i32_75 : i32
    scf.if %282 {
      %c0_76 = arith.constant 0 : index
      %c0_77 = arith.constant 0 : index
      %283 = vector.load %arg7[%c0_76, %c0_77] : memref<2x32xf32, #tpu.memory_space<vmem>>, vector<2x32xf32>
      tpu.vector_store %arg7[%c0_76, %c0_77], %273 {strides = array<i32>} : memref<2x32xf32, #tpu.memory_space<vmem>>, vector<2x32xf32>,
      %c0_78 = arith.constant 0 : index
      %c0_79 = arith.constant 0 : index
      %284 = vector.load %arg8[%c0_78, %c0_79] : memref<2x32xf32, #tpu.memory_space<vmem>>, vector<2x32xf32>
      tpu.vector_store %arg8[%c0_78, %c0_79], %271 {strides = array<i32>} : memref<2x32xf32, #tpu.memory_space<vmem>>, vector<2x32xf32>,
    } else {
    }
    return
  }
  func.func @transform_0(%arg0: i32, %arg1: i32) -> (i32, i32, i32) {
    %c0_i32 = arith.constant 0 : i32
    %c0_i32_0 = arith.constant 0 : i32
    return %arg1, %arg0, %c0_i32 : i32, i32, i32
  }
  func.func @transform_1(%arg0: i32, %arg1: i32) -> (i32, i32) {
    %c0_i32 = arith.constant 0 : i32
    %c0_i32_0 = arith.constant 0 : i32
    %c0_i32_1 = arith.constant 0 : i32
    return %c0_i32, %c0_i32_0 : i32, i32
  }
  func.func @transform_2(%arg0: i32, %arg1: i32) -> (i32, i32) {
    %c0_i32 = arith.constant 0 : i32
    %c0_i32_0 = arith.constant 0 : i32
    return %arg0, %c0_i32 : i32, i32
  }
  func.func @transform_3(%arg0: i32, %arg1: i32) -> (i32, i32) {
    %c0_i32 = arith.constant 0 : i32
    %c0_i32_0 = arith.constant 0 : i32
    return %arg0, %c0_i32 : i32, i32
  }
  func.func @transform_4(%arg0: i32, %arg1: i32) -> (i32, i32, i32) {
    %c0_i32 = arith.constant 0 : i32
    %c0_i32_0 = arith.constant 0 : i32
    return %arg1, %arg0, %c0_i32 : i32, i32, i32
  }
  func.func @transform_5(%arg0: i32, %arg1: i32) -> (i32, i32) {
    %c0_i32 = arith.constant 0 : i32
    %c0_i32_0 = arith.constant 0 : i32
    return %arg0, %c0_i32 : i32, i32
  }
  func.func @transform_6(%arg0: i32, %arg1: i32) -> (i32, i32) {
    %c0_i32 = arith.constant 0 : i32
    %c0_i32_0 = arith.constant 0 : i32
    return %arg0, %c0_i32 : i32, i32
  }
}

</mosaic_0001>

<llo_original>
// kernel: native_custom_lstm.1
$region0: #{native_custom_lstm.1}
  #allocation0 [shape = 'u32[]', space=smem, size = 0x4, offset = 0x4, fixed_abs, tag = 'smem constant byte address 0x4 - core index']
  #allocation1 [shape = 'u32[72,128]{1,0:T(1,128)}', space=vmem, size = 0x9000, scoped, tag = 'internal scratch']
  #allocation2 [shape = 'f32[2,32]{1,0:T(2,128)}', space=vmem, size = 0x400, scoped, tag = 'scratch operand']
  #allocation3 [shape = 'f32[2,32]{1,0:T(2,128)}', space=vmem, size = 0x400, scoped, tag = 'scratch operand']
  %s0 = inlined_call_operand.vmem [shape: f32[8,2,128], index: 0, kind: input, shape index: {}]
  %s1 = inlined_call_operand.vmem [shape: f32[32,128], index: 1, kind: input, shape index: {}]
  %s2 = inlined_call_operand.vmem [shape: f32[2,32], index: 2, kind: input, shape index: {}, may-alias: {2,3}]
  %s3 = inlined_call_operand.vmem [shape: f32[2,32], index: 3, kind: input, shape index: {}, may-alias: {2,3}]
  %s4 = inlined_call_operand.vmem [shape: f32[8,2,32], index: 4, kind: output, shape index: {0}]
  %s5 = inlined_call_operand.hbm [shape: f32[2,32], index: 5, kind: output, shape index: {1}]
  %s6 = inlined_call_operand.hbm [shape: f32[2,32], index: 6, kind: output, shape index: {2}]
  %7 = xla_tuple %s4, %s5, %s6
  %s8 = sld [smem:[#allocation0]]
  $region50: #{native_custom_lstm.1} parent=0
    _
  %s10 = ssub.s32 1, %s8
  %s11 = scalar_select 0, %s10, %s8
  $region1: #{native_custom_lstm.1} parent=0
    #allocation4 [shape = 'u8[1024]{0}', space=vmem, size = 0x400, scoped, tag = 'output window, operand 1, single buffered']
    #allocation5 [shape = 's32[1]{0}', space=sflag, size = 0x4, scoped, tag = 'scoped memory for native_custom_lstm.1']
    #allocation6 [shape = 'u8[1024]{0}', space=vmem, size = 0x400, scoped, tag = 'output window, operand 2, single buffered']
    #allocation7 [shape = 's32[1]{0}', space=sflag, size = 0x4, scoped, tag = 'scoped memory for native_custom_lstm.1']
    %12 = vsyncpa [#allocation5], 0
    %13 = vsyncpa [#allocation7], 0
    // Predicated region
    $region2: #{native_custom_lstm.1} parent=1 // pred_check
      _
    $region3: #{native_custom_lstm.1} parent=1 // pred_check_branch
      %15 = sbr.rel (0) target = $region5
    $region4: #{native_custom_lstm.1} parent=1 // pred_region
      _
    $region5: #{native_custom_lstm.1} parent=1 // pred_fallthru
      _
    // Predicated region
    $region6: #{native_custom_lstm.1} parent=1 // pred_check
      _
    $region7: #{native_custom_lstm.1} parent=1 // pred_check_branch
      %17 = sbr.rel (0) target = $region9
    $region8: #{native_custom_lstm.1} parent=1 // pred_region
      _
    $region9: #{native_custom_lstm.1} parent=1 // pred_fallthru
      _
    // Predicated region
    $region10: #{native_custom_lstm.1} parent=1 // pred_check
      _
    $region11: #{native_custom_lstm.1} parent=1 // pred_check_branch
      %19 = sbr.rel (0) target = $region13
    $region12: #{native_custom_lstm.1} parent=1 // pred_region
      _
    $region13: #{native_custom_lstm.1} parent=1 // pred_fallthru
      _
    // Predicated region
    $region14: #{native_custom_lstm.1} parent=1 // pred_check
      _
    $region15: #{native_custom_lstm.1} parent=1 // pred_check_branch
      %21 = sbr.rel (0) target = $region17
    $region16: #{native_custom_lstm.1} parent=1 // pred_region
      _
    $region17: #{native_custom_lstm.1} parent=1 // pred_fallthru
      _
    %p22 = scmp.eq.s32.totalorder 0, 0
    // Predicated region
    $region18: #{native_custom_lstm.1} parent=1 // pred_check
      %p23 = pneg %p22
    $region19: #{native_custom_lstm.1} parent=1 // pred_check_branch
      %25 = sbr.rel (%p23) target = $region21
    $region20: #{native_custom_lstm.1} parent=1 // pred_region
      %v26 = vld [vmem:[%s2] sm:$0x3]
      %vm27 = vcmask 254976
      %28 = vst.msk [vmem:[#allocation2] sm:$0x3] %vm27, %v26
      %v29 = vld [vmem:[%s3] sm:$0x3]
      %30 = vst.msk [vmem:[#allocation3] sm:$0x3] %vm27, %v29
    $region21: #{native_custom_lstm.1} parent=1 // pred_fallthru
      _
    %v31 = vld [vmem:[%s1] sm:$0xff]
    %v32 = vld [vmem:[%s1 + $0x8] sm:$0xff]
    %v33 = vld [vmem:[%s1 + $0x10] sm:$0xff]
    %v34 = vld [vmem:[%s1 + $0x18] sm:$0xff]
    %v35 = vld [vmem:[#allocation2] sm:$0x3]
    %v36 = vld [vmem:[#allocation3] sm:$0x3]
    %v37 = vld [vmem:[%s0] sm:$0x3]
    %vm38 = vcmask 261120
    %v40 = vsel %vm38, %v35, 0
    %42 = vmatpush.msra.mxu0 0.0
    %43 = vmatpush.msra.mxu0 0.0
    %44 = vmatpush.msra.mxu0 0.0
    %45 = vmatpush.msra.mxu0 0.0
    %46 = vmatpush.msra.mxu0 0.0
    %47 = vmatpush.msra.mxu0 0.0
    %48 = vmatpush.msra.mxu0 0.0
    %49 = vmatpush.msra.mxu0 0.0
    %50 = vmatpush.msra.mxu0 0.0
    %51 = vmatpush.msra.mxu0 0.0
    %52 = vmatpush.msra.mxu0 0.0
    %53 = vmatpush.msra.mxu0 0.0
    %54 = vmatpush.msra.mxu0 %v34
    %55 = vmatpush.msra.mxu0 %v33
    %56 = vmatpush.msra.mxu0 %v32
    %57 = vmatpush.msra.mxu0 %v31
    %58 = vmatmul.f32.gmra.mxu0 %v40
    %v59 = vpop.f32.mrf.mxu0
    %v60 = vadd.f32 0.0, %v59
    %61 = vdwg.mxu0
    %v62 = vadd.f32 %v37, %v60
    %v63 = vxor.u32 %v62, 2147483648
    %v64 = vmul.f32 %v63, 1.442695
    %v65 = vpow.pop %v64
    %v66 = vadd.f32 %v65, 1.0
    %v67 = vrcp.pop %v66
    %v68 = vmul.f32 %v66, %v67
    %v69 = vsub.f32 1.0, %v68
    %v70 = vmul.f32 %v67, %v69
    %v71 = vadd.f32 %v67, %v70
    %vm72 = vweird.f32 %v66
    %vm73 = vweird.f32 %v67
    %vm74 = vmor %vm72, %vm73
    %v75 = vsel %vm74, %v67, %v71
    %v76 = vand.u32 2147483647, %v66
    %vm77 = vcmp.eq.f32.partialorder %v76, 8.507059e+37
    %v78 = vand.u32 %v66, 2147483648
    %v79 = vor.u32 1.1754944e-38, %v78
    %v80 = vsel %vm77, %v79, %v75
    %v81 = vmul.f32 1.0, %v80
    %v82 = vtanh.pop %v62
    %84 = vrot.lane.b32.xlu0 %v36, 32
    %v85 = vpop.permute.xlu0 %84
    %v87 = vmul.f32 %v81, %v85
    %89 = vrot.lane.b32.xlu0 %v82, 64
    %v90 = vpop.permute.xlu0 %89
    %v92 = vmul.f32 %v81, %v90
    %94 = vrot.lane.b32.xlu0 %v92, 32
    %v95 = vpop.permute.xlu0 %94
    %v97 = vadd.f32 %v87, %v95
    %v98 = vtanh.pop %v97
    %100 = vrot.lane.b32.xlu0 %v98, 64
    %v101 = vpop.permute.xlu0 %100
    %v103 = vmul.f32 %v81, %v101
    %105 = vrot.lane.b32.xlu0 %v103, 32
    %v106 = vpop.permute.xlu0 %105
    %vm108 = vcmask 254976
    %109 = vst.msk [vmem:[%s4] sm:$0x3] %vm108, %v106
    %s110 = scalar_lea.vmem %s0, 2
    %v111 = vld [vmem:[%s110] sm:$0x3]
    %v112 = vsel %vm38, %v106, 0
    %114 = vmatpush.msra.mxu0 0.0
    %115 = vmatpush.msra.mxu0 0.0
    %116 = vmatpush.msra.mxu0 0.0
    %117 = vmatpush.msra.mxu0 0.0
    %118 = vmatpush.msra.mxu0 0.0
    %119 = vmatpush.msra.mxu0 0.0
    %120 = vmatpush.msra.mxu0 0.0
    %121 = vmatpush.msra.mxu0 0.0
    %122 = vmatpush.msra.mxu0 0.0
    %123 = vmatpush.msra.mxu0 0.0
    %124 = vmatpush.msra.mxu0 0.0
    %125 = vmatpush.msra.mxu0 0.0
    %126 = vmatpush.msra.mxu0 %v34
    %127 = vmatpush.msra.mxu0 %v33
    %128 = vmatpush.msra.mxu0 %v32
    %129 = vmatpush.msra.mxu0 %v31
    %130 = vmatmul.f32.gmra.mxu0 %v112
    %v131 = vpop.f32.mrf.mxu0
    %v132 = vadd.f32 0.0, %v131
    %133 = vdwg.mxu0
    %v134 = vadd.f32 %v111, %v132
    %v135 = vxor.u32 %v134, 2147483648
    %v136 = vmul.f32 %v135, 1.442695
    %v137 = vpow.pop %v136
    %v138 = vadd.f32 %v137, 1.0
    %v139 = vrcp.pop %v138
    %v140 = vmul.f32 %v138, %v139
    %v141 = vsub.f32 1.0, %v140
    %v142 = vmul.f32 %v139, %v141
    %v143 = vadd.f32 %v139, %v142
    %vm144 = vweird.f32 %v138
    %vm145 = vweird.f32 %v139
    %vm146 = vmor %vm144, %vm145
    %v147 = vsel %vm146, %v139, %v143
    %v148 = vand.u32 2147483647, %v138
    %vm149 = vcmp.eq.f32.partialorder %v148, 8.507059e+37
    %v150 = vand.u32 %v138, 2147483648
    %v151 = vor.u32 1.1754944e-38, %v150
    %v152 = vsel %vm149, %v151, %v147
    %v153 = vmul.f32 1.0, %v152
    %v154 = vtanh.pop %v134
    %v155 = vmul.f32 %v153, %v97
    %157 = vrot.lane.b32.xlu0 %v154, 64
    %v158 = vpop.permute.xlu0 %157
    %v160 = vmul.f32 %v153, %v158
    %162 = vrot.lane.b32.xlu0 %v160, 32
    %v163 = vpop.permute.xlu0 %162
    %v165 = vadd.f32 %v155, %v163
    %v166 = vtanh.pop %v165
    %168 = vrot.lane.b32.xlu0 %v166, 64
    %v169 = vpop.permute.xlu0 %168
    %v171 = vmul.f32 %v153, %v169
    %173 = vrot.lane.b32.xlu0 %v171, 32
    %v174 = vpop.permute.xlu0 %173
    %s176 = scalar_lea.vmem %s4, 2
    %177 = vst.msk [vmem:[%s176] sm:$0x3] %vm108, %v174
    %s178 = scalar_lea.vmem %s0, 4
    %v179 = vld [vmem:[%s178] sm:$0x3]
    %v180 = vsel %vm38, %v174, 0
    %182 = vmatpush.msra.mxu0 0.0
    %183 = vmatpush.msra.mxu0 0.0
    %184 = vmatpush.msra.mxu0 0.0
    %185 = vmatpush.msra.mxu0 0.0
    %186 = vmatpush.msra.mxu0 0.0
    %187 = vmatpush.msra.mxu0 0.0
    %188 = vmatpush.msra.mxu0 0.0
    %189 = vmatpush.msra.mxu0 0.0
    %190 = vmatpush.msra.mxu0 0.0
    %191 = vmatpush.msra.mxu0 0.0
    %192 = vmatpush.msra.mxu0 0.0
    %193 = vmatpush.msra.mxu0 0.0
    %194 = vmatpush.msra.mxu0 %v34
    %195 = vmatpush.msra.mxu0 %v33
    %196 = vmatpush.msra.mxu0 %v32
    %197 = vmatpush.msra.mxu0 %v31
    %198 = vmatmul.f32.gmra.mxu0 %v180
    %v199 = vpop.f32.mrf.mxu0
    %v200 = vadd.f32 0.0, %v199
    %201 = vdwg.mxu0
    %v202 = vadd.f32 %v179, %v200
    %v203 = vxor.u32 %v202, 2147483648
    %v204 = vmul.f32 %v203, 1.442695
    %v205 = vpow.pop %v204
    %v206 = vadd.f32 %v205, 1.0
    %v207 = vrcp.pop %v206
    %v208 = vmul.f32 %v206, %v207
    %v209 = vsub.f32 1.0, %v208
    %v210 = vmul.f32 %v207, %v209
    %v211 = vadd.f32 %v207, %v210
    %vm212 = vweird.f32 %v206
    %vm213 = vweird.f32 %v207
    %vm214 = vmor %vm212, %vm213
    %v215 = vsel %vm214, %v207, %v211
    %v216 = vand.u32 2147483647, %v206
    %vm217 = vcmp.eq.f32.partialorder %v216, 8.507059e+37
    %v218 = vand.u32 %v206, 2147483648
    %v219 = vor.u32 1.1754944e-38, %v218
    %v220 = vsel %vm217, %v219, %v215
    %v221 = vmul.f32 1.0, %v220
    %v222 = vtanh.pop %v202
    %v223 = vmul.f32 %v221, %v165
    %225 = vrot.lane.b32.xlu0 %v222, 64
    %v226 = vpop.permute.xlu0 %225
    %v228 = vmul.f32 %v221, %v226
    %230 = vrot.lane.b32.xlu0 %v228, 32
    %v231 = vpop.permute.xlu0 %230
    %v233 = vadd.f32 %v223, %v231
    %v234 = vtanh.pop %v233
    %236 = vrot.lane.b32.xlu0 %v234, 64
    %v237 = vpop.permute.xlu0 %236
    %v239 = vmul.f32 %v221, %v237
    %241 = vrot.lane.b32.xlu0 %v239, 32
    %v242 = vpop.permute.xlu0 %241
    %s244 = scalar_lea.vmem %s4, 4
    %245 = vst.msk [vmem:[%s244] sm:$0x3] %vm108, %v242
    %s246 = scalar_lea.vmem %s0, 6
    %v247 = vld [vmem:[%s246] sm:$0x3]
    %v248 = vsel %vm38, %v242, 0
    %250 = vmatpush.msra.mxu0 0.0
    %251 = vmatpush.msra.mxu0 0.0
    %252 = vmatpush.msra.mxu0 0.0
    %253 = vmatpush.msra.mxu0 0.0
    %254 = vmatpush.msra.mxu0 0.0
    %255 = vmatpush.msra.mxu0 0.0
    %256 = vmatpush.msra.mxu0 0.0
    %257 = vmatpush.msra.mxu0 0.0
    %258 = vmatpush.msra.mxu0 0.0
    %259 = vmatpush.msra.mxu0 0.0
    %260 = vmatpush.msra.mxu0 0.0
    %261 = vmatpush.msra.mxu0 0.0
    %262 = vmatpush.msra.mxu0 %v34
    %263 = vmatpush.msra.mxu0 %v33
    %264 = vmatpush.msra.mxu0 %v32
    %265 = vmatpush.msra.mxu0 %v31
    %266 = vmatmul.f32.gmra.mxu0 %v248
    %v267 = vpop.f32.mrf.mxu0
    %v268 = vadd.f32 0.0, %v267
    %269 = vdwg.mxu0
    %v270 = vadd.f32 %v247, %v268
    %v271 = vxor.u32 %v270, 2147483648
    %v272 = vmul.f32 %v271, 1.442695
    %v273 = vpow.pop %v272
    %v274 = vadd.f32 %v273, 1.0
    %v275 = vrcp.pop %v274
    %v276 = vmul.f32 %v274, %v275
    %v277 = vsub.f32 1.0, %v276
    %v278 = vmul.f32 %v275, %v277
    %v279 = vadd.f32 %v275, %v278
    %vm280 = vweird.f32 %v274
    %vm281 = vweird.f32 %v275
    %vm282 = vmor %vm280, %vm281
    %v283 = vsel %vm282, %v275, %v279
    %v284 = vand.u32 2147483647, %v274
    %vm285 = vcmp.eq.f32.partialorder %v284, 8.507059e+37
    %v286 = vand.u32 %v274, 2147483648
    %v287 = vor.u32 1.1754944e-38, %v286
    %v288 = vsel %vm285, %v287, %v283
    %v289 = vmul.f32 1.0, %v288
    %v290 = vtanh.pop %v270
    %v291 = vmul.f32 %v289, %v233
    %293 = vrot.lane.b32.xlu0 %v290, 64
    %v294 = vpop.permute.xlu0 %293
    %v296 = vmul.f32 %v289, %v294
    %298 = vrot.lane.b32.xlu0 %v296, 32
    %v299 = vpop.permute.xlu0 %298
    %v301 = vadd.f32 %v291, %v299
    %v302 = vtanh.pop %v301
    %304 = vrot.lane.b32.xlu0 %v302, 64
    %v305 = vpop.permute.xlu0 %304
    %v307 = vmul.f32 %v289, %v305
    %309 = vrot.lane.b32.xlu0 %v307, 32
    %v310 = vpop.permute.xlu0 %309
    %s312 = scalar_lea.vmem %s4, 6
    %313 = vst.msk [vmem:[%s312] sm:$0x3] %vm108, %v310
    %s314 = scalar_lea.vmem %s0, 8
    %v315 = vld [vmem:[%s314] sm:$0x3]
    %v316 = vsel %vm38, %v310, 0
    %318 = vmatpush.msra.mxu0 0.0
    %319 = vmatpush.msra.mxu0 0.0
    %320 = vmatpush.msra.mxu0 0.0
    %321 = vmatpush.msra.mxu0 0.0
    %322 = vmatpush.msra.mxu0 0.0
    %323 = vmatpush.msra.mxu0 0.0
    %324 = vmatpush.msra.mxu0 0.0
    %325 = vmatpush.msra.mxu0 0.0
    %326 = vmatpush.msra.mxu0 0.0
    %327 = vmatpush.msra.mxu0 0.0
    %328 = vmatpush.msra.mxu0 0.0
    %329 = vmatpush.msra.mxu0 0.0
    %330 = vmatpush.msra.mxu0 %v34
    %331 = vmatpush.msra.mxu0 %v33
    %332 = vmatpush.msra.mxu0 %v32
    %333 = vmatpush.msra.mxu0 %v31
    %334 = vmatmul.f32.gmra.mxu0 %v316
    %v335 = vpop.f32.mrf.mxu0
    %v336 = vadd.f32 0.0, %v335
    %337 = vdwg.mxu0
    %v338 = vadd.f32 %v315, %v336
    %v339 = vxor.u32 %v338, 2147483648
    %v340 = vmul.f32 %v339, 1.442695
    %v341 = vpow.pop %v340
    %v342 = vadd.f32 %v341, 1.0
    %v343 = vrcp.pop %v342
    %v344 = vmul.f32 %v342, %v343
    %v345 = vsub.f32 1.0, %v344
    %v346 = vmul.f32 %v343, %v345
    %v347 = vadd.f32 %v343, %v346
    %vm348 = vweird.f32 %v342
    %vm349 = vweird.f32 %v343
    %vm350 = vmor %vm348, %vm349
    %v351 = vsel %vm350, %v343, %v347
    %v352 = vand.u32 2147483647, %v342
    %vm353 = vcmp.eq.f32.partialorder %v352, 8.507059e+37
    %v354 = vand.u32 %v342, 2147483648
    %v355 = vor.u32 1.1754944e-38, %v354
    %v356 = vsel %vm353, %v355, %v351
    %v357 = vmul.f32 1.0, %v356
    %v358 = vtanh.pop %v338
    %v359 = vmul.f32 %v357, %v301
    %361 = vrot.lane.b32.xlu0 %v358, 64
    %v362 = vpop.permute.xlu0 %361
    %v364 = vmul.f32 %v357, %v362
    %366 = vrot.lane.b32.xlu0 %v364, 32
    %v367 = vpop.permute.xlu0 %366
    %v369 = vadd.f32 %v359, %v367
    %v370 = vtanh.pop %v369
    %372 = vrot.lane.b32.xlu0 %v370, 64
    %v373 = vpop.permute.xlu0 %372
    %v375 = vmul.f32 %v357, %v373
    %377 = vrot.lane.b32.xlu0 %v375, 32
    %v378 = vpop.permute.xlu0 %377
    %s380 = scalar_lea.vmem %s4, 8
    %381 = vst.msk [vmem:[%s380] sm:$0x3] %vm108, %v378
    %s382 = scalar_lea.vmem %s0, 10
    %v383 = vld [vmem:[%s382] sm:$0x3]
    %v384 = vsel %vm38, %v378, 0
    %386 = vmatpush.msra.mxu0 0.0
    %387 = vmatpush.msra.mxu0 0.0
    %388 = vmatpush.msra.mxu0 0.0
    %389 = vmatpush.msra.mxu0 0.0
    %390 = vmatpush.msra.mxu0 0.0
    %391 = vmatpush.msra.mxu0 0.0
    %392 = vmatpush.msra.mxu0 0.0
    %393 = vmatpush.msra.mxu0 0.0
    %394 = vmatpush.msra.mxu0 0.0
    %395 = vmatpush.msra.mxu0 0.0
    %396 = vmatpush.msra.mxu0 0.0
    %397 = vmatpush.msra.mxu0 0.0
    %398 = vmatpush.msra.mxu0 %v34
    %399 = vmatpush.msra.mxu0 %v33
    %400 = vmatpush.msra.mxu0 %v32
    %401 = vmatpush.msra.mxu0 %v31
    %402 = vmatmul.f32.gmra.mxu0 %v384
    %v403 = vpop.f32.mrf.mxu0
    %v404 = vadd.f32 0.0, %v403
    %405 = vdwg.mxu0
    %v406 = vadd.f32 %v383, %v404
    %v407 = vxor.u32 %v406, 2147483648
    %v408 = vmul.f32 %v407, 1.442695
    %v409 = vpow.pop %v408
    %v410 = vadd.f32 %v409, 1.0
    %v411 = vrcp.pop %v410
    %v412 = vmul.f32 %v410, %v411
    %v413 = vsub.f32 1.0, %v412
    %v414 = vmul.f32 %v411, %v413
    %v415 = vadd.f32 %v411, %v414
    %vm416 = vweird.f32 %v410
    %vm417 = vweird.f32 %v411
    %vm418 = vmor %vm416, %vm417
    %v419 = vsel %vm418, %v411, %v415
    %v420 = vand.u32 2147483647, %v410
    %vm421 = vcmp.eq.f32.partialorder %v420, 8.507059e+37
    %v422 = vand.u32 %v410, 2147483648
    %v423 = vor.u32 1.1754944e-38, %v422
    %v424 = vsel %vm421, %v423, %v419
    %v425 = vmul.f32 1.0, %v424
    %v426 = vtanh.pop %v406
    %v427 = vmul.f32 %v425, %v369
    %429 = vrot.lane.b32.xlu0 %v426, 64
    %v430 = vpop.permute.xlu0 %429
    %v432 = vmul.f32 %v425, %v430
    %434 = vrot.lane.b32.xlu0 %v432, 32
    %v435 = vpop.permute.xlu0 %434
    %v437 = vadd.f32 %v427, %v435
    %v438 = vtanh.pop %v437
    %440 = vrot.lane.b32.xlu0 %v438, 64
    %v441 = vpop.permute.xlu0 %440
    %v443 = vmul.f32 %v425, %v441
    %445 = vrot.lane.b32.xlu0 %v443, 32
    %v446 = vpop.permute.xlu0 %445
    %s448 = scalar_lea.vmem %s4, 10
    %449 = vst.msk [vmem:[%s448] sm:$0x3] %vm108, %v446
    %s450 = scalar_lea.vmem %s0, 12
    %v451 = vld [vmem:[%s450] sm:$0x3]
    %v452 = vsel %vm38, %v446, 0
    %454 = vmatpush.msra.mxu0 0.0
    %455 = vmatpush.msra.mxu0 0.0
    %456 = vmatpush.msra.mxu0 0.0
    %457 = vmatpush.msra.mxu0 0.0
    %458 = vmatpush.msra.mxu0 0.0
    %459 = vmatpush.msra.mxu0 0.0
    %460 = vmatpush.msra.mxu0 0.0
    %461 = vmatpush.msra.mxu0 0.0
    %462 = vmatpush.msra.mxu0 0.0
    %463 = vmatpush.msra.mxu0 0.0
    %464 = vmatpush.msra.mxu0 0.0
    %465 = vmatpush.msra.mxu0 0.0
    %466 = vmatpush.msra.mxu0 %v34
    %467 = vmatpush.msra.mxu0 %v33
    %468 = vmatpush.msra.mxu0 %v32
    %469 = vmatpush.msra.mxu0 %v31
    %470 = vmatmul.f32.gmra.mxu0 %v452
    %v471 = vpop.f32.mrf.mxu0
    %v472 = vadd.f32 0.0, %v471
    %473 = vdwg.mxu0
    %v474 = vadd.f32 %v451, %v472
    %v475 = vxor.u32 %v474, 2147483648
    %v476 = vmul.f32 %v475, 1.442695
    %v477 = vpow.pop %v476
    %v478 = vadd.f32 %v477, 1.0
    %v479 = vrcp.pop %v478
    %v480 = vmul.f32 %v478, %v479
    %v481 = vsub.f32 1.0, %v480
    %v482 = vmul.f32 %v479, %v481
    %v483 = vadd.f32 %v479, %v482
    %vm484 = vweird.f32 %v478
    %vm485 = vweird.f32 %v479
    %vm486 = vmor %vm484, %vm485
    %v487 = vsel %vm486, %v479, %v483
    %v488 = vand.u32 2147483647, %v478
    %vm489 = vcmp.eq.f32.partialorder %v488, 8.507059e+37
    %v490 = vand.u32 %v478, 2147483648
    %v491 = vor.u32 1.1754944e-38, %v490
    %v492 = vsel %vm489, %v491, %v487
    %v493 = vmul.f32 1.0, %v492
    %v494 = vtanh.pop %v474
    %v495 = vmul.f32 %v493, %v437
    %497 = vrot.lane.b32.xlu0 %v494, 64
    %v498 = vpop.permute.xlu0 %497
    %v500 = vmul.f32 %v493, %v498
    %502 = vrot.lane.b32.xlu0 %v500, 32
    %v503 = vpop.permute.xlu0 %502
    %v505 = vadd.f32 %v495, %v503
    %v506 = vtanh.pop %v505
    %508 = vrot.lane.b32.xlu0 %v506, 64
    %v509 = vpop.permute.xlu0 %508
    %v511 = vmul.f32 %v493, %v509
    %513 = vrot.lane.b32.xlu0 %v511, 32
    %v514 = vpop.permute.xlu0 %513
    %s516 = scalar_lea.vmem %s4, 12
    %517 = vst.msk [vmem:[%s516] sm:$0x3] %vm108, %v514
    %s518 = scalar_lea.vmem %s0, 14
    %v519 = vld [vmem:[%s518] sm:$0x3]
    %v520 = vsel %vm38, %v514, 0
    %522 = vmatpush.msra.mxu0 0.0
    %523 = vmatpush.msra.mxu0 0.0
    %524 = vmatpush.msra.mxu0 0.0
    %525 = vmatpush.msra.mxu0 0.0
    %526 = vmatpush.msra.mxu0 0.0
    %527 = vmatpush.msra.mxu0 0.0
    %528 = vmatpush.msra.mxu0 0.0
    %529 = vmatpush.msra.mxu0 0.0
    %530 = vmatpush.msra.mxu0 0.0
    %531 = vmatpush.msra.mxu0 0.0
    %532 = vmatpush.msra.mxu0 0.0
    %533 = vmatpush.msra.mxu0 0.0
    %534 = vmatpush.msra.mxu0 %v34
    %535 = vmatpush.msra.mxu0 %v33
    %536 = vmatpush.msra.mxu0 %v32
    %537 = vmatpush.msra.mxu0 %v31
    %538 = vmatmul.f32.gmra.mxu0 %v520
    %v539 = vpop.f32.mrf.mxu0
    %v540 = vadd.f32 0.0, %v539
    %541 = vdwg.mxu0
    %v542 = vadd.f32 %v519, %v540
    %v543 = vxor.u32 %v542, 2147483648
    %v544 = vmul.f32 %v543, 1.442695
    %v545 = vpow.pop %v544
    %v546 = vadd.f32 %v545, 1.0
    %v547 = vrcp.pop %v546
    %v548 = vmul.f32 %v546, %v547
    %v549 = vsub.f32 1.0, %v548
    %v550 = vmul.f32 %v547, %v549
    %v551 = vadd.f32 %v547, %v550
    %vm552 = vweird.f32 %v546
    %vm553 = vweird.f32 %v547
    %vm554 = vmor %vm552, %vm553
    %v555 = vsel %vm554, %v547, %v551
    %v556 = vand.u32 2147483647, %v546
    %vm557 = vcmp.eq.f32.partialorder %v556, 8.507059e+37
    %v558 = vand.u32 %v546, 2147483648
    %v559 = vor.u32 1.1754944e-38, %v558
    %v560 = vsel %vm557, %v559, %v555
    %v561 = vmul.f32 1.0, %v560
    %v562 = vtanh.pop %v542
    %v563 = vmul.f32 %v561, %v505
    %565 = vrot.lane.b32.xlu0 %v562, 64
    %v566 = vpop.permute.xlu0 %565
    %v568 = vmul.f32 %v561, %v566
    %570 = vrot.lane.b32.xlu0 %v568, 32
    %v571 = vpop.permute.xlu0 %570
    %v573 = vadd.f32 %v563, %v571
    %v574 = vtanh.pop %v573
    %576 = vrot.lane.b32.xlu0 %v574, 64
    %v577 = vpop.permute.xlu0 %576
    %v579 = vmul.f32 %v561, %v577
    %581 = vrot.lane.b32.xlu0 %v579, 32
    %v582 = vpop.permute.xlu0 %581
    %s584 = scalar_lea.vmem %s4, 14
    %585 = vst.msk [vmem:[%s584] sm:$0x3] %vm108, %v582
    %586 = vst.msk [vmem:[#allocation2] sm:$0x3] %vm108, %v582
    %588 = vrot.lane.b32.xlu0 %v573, 96
    %v589 = vpop.permute.xlu0 %588
    %591 = vst.msk [vmem:[#allocation3] sm:$0x3] %vm108, %v589
    // Predicated region
    $region22: #{native_custom_lstm.1} parent=1 // pred_check
      %p592 = pneg %p22
    $region23: #{native_custom_lstm.1} parent=1 // pred_check_branch
      %594 = sbr.rel (%p592) target = $region25
    $region24: #{native_custom_lstm.1} parent=1 // pred_region
      %595 = vst.msk [vmem:[#allocation4] sm:$0x3] %vm108, %v582
      %596 = vst.msk [vmem:[#allocation6] sm:$0x3] %vm108, %v589
    $region25: #{native_custom_lstm.1} parent=1 // pred_fallthru
      _
    // Predicated region
    $region26: #{native_custom_lstm.1} parent=1 // pred_check
      _
    $region27: #{native_custom_lstm.1} parent=1 // pred_check_branch
      %598 = sbr.rel (0) target = $region29
    $region28: #{native_custom_lstm.1} parent=1 // pred_region
      _
    $region29: #{native_custom_lstm.1} parent=1 // pred_fallthru
      _
    // Predicated region
    $region30: #{native_custom_lstm.1} parent=1 // pred_check
      _
    $region31: #{native_custom_lstm.1} parent=1 // pred_check_branch
      %600 = sbr.rel (0) target = $region33
    $region32: #{native_custom_lstm.1} parent=1 // pred_region
      %602 = vsyncadd [#allocation5], 0
      %s604 = sshll.u32 [#allocation4], 4
      %s605 = int_to_ptr.vmem [resolvable:$true] %s604
      %s606 = sshll.u32 %s5, 4
      %s607 = int_to_ptr.hbm [resolvable:$true] %s606
      %609 = dma.vmem_to_hbm [thread:$0]  %s605, 32, %s607, [#allocation5]
    $region33: #{native_custom_lstm.1} parent=1 // pred_fallthru
      _
    // Predicated region
    $region34: #{native_custom_lstm.1} parent=1 // pred_check
      _
    $region35: #{native_custom_lstm.1} parent=1 // pred_check_branch
      %611 = sbr.rel (0) target = $region37
    $region36: #{native_custom_lstm.1} parent=1 // pred_region
      %613 = vsyncadd [#allocation7], 0
      %s615 = sshll.u32 [#allocation6], 4
      %s616 = int_to_ptr.vmem [resolvable:$true] %s615
      %s617 = sshll.u32 %s6, 4
      %s618 = int_to_ptr.hbm [resolvable:$true] %s617
      %620 = dma.vmem_to_hbm [thread:$0]  %s616, 32, %s618, [#allocation7]
    $region37: #{native_custom_lstm.1} parent=1 // pred_fallthru
      _
    // Predicated region
    $region38: #{native_custom_lstm.1} parent=1 // pred_check
      _
    $region39: #{native_custom_lstm.1} parent=1 // pred_check_branch
      %622 = sbr.rel (0) target = $region41
    $region40: #{native_custom_lstm.1} parent=1 // pred_region
      _
    $region41: #{native_custom_lstm.1} parent=1 // pred_fallthru
      _
    // Predicated region
    $region42: #{native_custom_lstm.1} parent=1 // pred_check
      _
    $region43: #{native_custom_lstm.1} parent=1 // pred_check_branch
      %624 = sbr.rel (0) target = $region45
    $region44: #{native_custom_lstm.1} parent=1 // pred_region
      %626 = dma.done [#allocation5], 32
    $region45: #{native_custom_lstm.1} parent=1 // pred_fallthru
      _
    // Predicated region
    $region46: #{native_custom_lstm.1} parent=1 // pred_check
      _
    $region47: #{native_custom_lstm.1} parent=1 // pred_check_branch
      %628 = sbr.rel (0) target = $region49
    $region48: #{native_custom_lstm.1} parent=1 // pred_region
      %630 = dma.done [#allocation7], 32
    $region49: #{native_custom_lstm.1} parent=1 // pred_fallthru
      _
    %631 = vsyncpa [#allocation5], 1
    %632 = vsyncpa [#allocation7], 1

</llo_original>
